<compile_context>
chip_gen: v5e
topology: v5e:2x2
jax: 0.10.0
libtpu: 0.0.40
codegen_flags: <defaults>
</compile_context>

<pallas_src>
import jax
import jax.numpy as jnp
from jax.experimental import pallas as pl
from jax.experimental.pallas import tpu as pltpu


CTX_PAD = 128   # context_dim slot padded to full lane width
H_PAD = 128     # hidden-dim slot padded to full lane width


def _round_up(a, b):
    return (a + b - 1) // b * b


# ---------------------------------------------------------------------------
# Pallas kernel (one row-tile per grid step)
#   pre1 = x @ W1x + one_hot(idx) @ (emb @ W1nb) + nodetype-contrib + b1
#   gate = sigmoid(pre1[:, :CTX_PAD]);  h1 = tanh(pre1[:, CTX_PAD:])
#   h2   = tanh(h1 @ W2 + b2)
#   out  = (h2 @ Wo + bo) * gate
# ---------------------------------------------------------------------------
def contextnet_kernel(x_ref, nt_ref, idx_ref,
                      w1x_ref, w1e_ref, w1nt_ref, b1_ref,
                      w2_ref, b2_ref, wo_ref, bo_ref,
                      out_ref):
    tile_rows = x_ref.shape[0]
    n_nodes_pad = w1e_ref.shape[0]
    ctx_pad = out_ref.shape[-1]

    x = x_ref[...]
    nt = nt_ref[...]

    # --- fused first layer: columns = [gate_pre | h1_pre] -------------------
    mm_dtype = w1x_ref.dtype
    pre1 = jnp.dot(x.astype(mm_dtype), w1x_ref[...],
                   preferred_element_type=jnp.float32)

    # Embedding gather fused as a one-hot matmul against the pre-folded
    # (emb @ W_nb) table (exact: one-hot selection in the MXU).
    iota = jax.lax.broadcasted_iota(jnp.int32, (tile_rows, n_nodes_pad), 1)
    onehot = (idx_ref[...] == iota).astype(w1e_ref.dtype)
    pre1 = pre1 + jnp.dot(onehot, w1e_ref[...],
                          preferred_element_type=jnp.float32)

    # nodetype contribution (only 2 input features): cheaper on the VPU than
    # another latency-dominated MXU push.
    w1nt = w1nt_ref[...]
    pre1 = pre1 + nt[:, 0:1] * w1nt[0:1, :] + nt[:, 1:2] * w1nt[1:2, :]
    pre1 = pre1 + b1_ref[...]

    gate = jax.nn.sigmoid(pre1[:, :ctx_pad])          # gated architecture
    h1 = jnp.tanh(pre1[:, ctx_pad:])                  # transfer fn = tanh

    # --- second hidden layer -------------------------------------------------
    h2 = jnp.tanh(jnp.dot(h1.astype(w2_ref.dtype), w2_ref[...],
                          preferred_element_type=jnp.float32) + b2_ref[...])

    # --- output linear + gating ----------------------------------------------
    out = jnp.dot(h2.astype(wo_ref.dtype), wo_ref[...],
                  preferred_element_type=jnp.float32) + bo_ref[...]
    out_ref[...] = (out * gate).astype(out_ref.dtype)


# ---------------------------------------------------------------------------
# Parameter construction / packing
# ---------------------------------------------------------------------------
def make_params(key, *, n_total_nodes, state_dim, node_bias_size,
                context_dim, h_dim):
    """Raw params, PyTorch layout but weights pre-transposed to [in, out]."""
    in_dim = state_dim + node_bias_size + 2
    ks = jax.random.split(key, 9)

    def lin(kw, kb, din, dout):
        w = jax.random.normal(kw, (din, dout), jnp.float32) * 0.1
        b = jax.random.normal(kb, (1, dout), jnp.float32) * 0.1
        return w, b

    wg, bg = lin(ks[0], ks[1], in_dim, context_dim)
    w1, b1 = lin(ks[2], ks[3], in_dim, h_dim)
    w2, b2 = lin(ks[4], ks[5], h_dim, h_dim)
    wo, bo = lin(ks[6], ks[7], h_dim, context_dim)
    emb = jax.random.normal(ks[8], (n_total_nodes, node_bias_size),
                            jnp.float32) * 0.1
    return dict(wg=wg, bg=bg, w1=w1, b1=b1, w2=w2, b2=b2, wo=wo, bo=bo,
                emb=emb)


def pack_params(params, *, matmul_dtype=jnp.float32):
    """One-time fold / pad of the raw parameters into the kernel layout.

    Fused first-layer columns: [gate slot (CTX_PAD) | h1 slot (H_PAD)].
    The embedding is pre-multiplied into the node-bias rows of the fused
    weight (emb @ W_nb), so the kernel only needs a one-hot matmul.
    All padding is with zeros -> numerics of the valid lanes are exact.
    """
    nb = params["emb"].shape[1]
    ctx = params["wg"].shape[1]
    h = params["w1"].shape[1]
    sd = params["wg"].shape[0] - nb - 2          # state_dim
    n_nodes = params["emb"].shape[0]
    n_nodes_pad = _round_up(n_nodes, 128)
    width = CTX_PAD + H_PAD

    def place(a, b):
        out = jnp.zeros((a.shape[0], width), jnp.float32)
        out = out.at[:, :a.shape[1]].set(a)
        out = out.at[:, CTX_PAD:CTX_PAD + b.shape[1]].set(b)
        return out

    wg, w1 = params["wg"], params["w1"]
    w1x = place(wg[:sd], w1[:sd])                              # x rows
    w1nb = place(wg[sd:sd + nb], w1[sd:sd + nb])               # node-bias rows
    w1e = jnp.zeros((n_nodes_pad, width), jnp.float32)
    w1e = w1e.at[:n_nodes].set(params["emb"] @ w1nb)           # fold embedding
    w1nt = place(wg[sd + nb:], w1[sd + nb:])                   # nodetype rows
    b1 = place(params["bg"], params["b1"])

    w2 = jnp.zeros((H_PAD, H_PAD), jnp.float32).at[:h, :h].set(params["w2"])
    b2 = jnp.zeros((1, H_PAD), jnp.float32).at[:, :h].set(params["b2"])
    wo = jnp.zeros((H_PAD, CTX_PAD), jnp.float32).at[:h, :ctx].set(params["wo"])
    bo = jnp.zeros((1, CTX_PAD), jnp.float32).at[:, :ctx].set(params["bo"])

    return dict(
        w1x=w1x.astype(matmul_dtype),
        w1e=w1e.astype(matmul_dtype),
        w1nt=w1nt,                      # consumed on the VPU, keep f32
        b1=b1, b2=b2, bo=bo,            # biases always f32
        w2=w2.astype(matmul_dtype),
        wo=wo.astype(matmul_dtype),
        state_dim=sd,
        context_dim=ctx,
    )


# ---------------------------------------------------------------------------
# Wrapper: row padding + pallas_call with a row grid
# ---------------------------------------------------------------------------
def contextnet_forward(packed, x, node_input, nodetype_input, *,
                       tile_rows=512):
    n = x.shape[0]
    sd = packed["state_dim"]
    ctx = packed["context_dim"]
    n_nodes_pad = packed["w1e"].shape[0]
    width = CTX_PAD + H_PAD

    # Row tile: big enough to amortize per-step overhead, small enough to be
    # comfortably inside v7x's 64 MiB VMEM (default 512 rows ~ <2 MiB live).
    tile = min(tile_rows, _round_up(n, 8))
    n_pad = _round_up(n, tile)
    grid = (n_pad // tile,)

    def pad_rows(a):
        extra = n_pad - a.shape[0]
        return jnp.pad(a, ((0, extra), (0, 0))) if extra else a

    x_p = pad_rows(x.astype(jnp.float32))
    nt_p = pad_rows(nodetype_input.astype(jnp.float32))
    idx_p = pad_rows(node_input.astype(jnp.int32).reshape(-1, 1))

    def row_spec(cols):
        return pl.BlockSpec((tile, cols), lambda i: (i, 0))

    def res_spec(shape):                     # resident across all grid steps
        return pl.BlockSpec(shape, lambda i: (0, 0))

    flops = 2 * n_pad * (sd * width + n_nodes_pad * width
                         + H_PAD * H_PAD + H_PAD * CTX_PAD)
    transcendentals = n_pad * (CTX_PAD + 2 * H_PAD)
    weight_bytes = sum(int(packed[k].size) * packed[k].dtype.itemsize
                       for k in ("w1x", "w1e", "w1nt", "b1", "w2", "b2",
                                 "wo", "bo"))
    bytes_accessed = (int(x_p.size) * 4 + int(nt_p.size) * 4
                      + int(idx_p.size) * 4 + n_pad * CTX_PAD * 4
                      + weight_bytes)

    out_pad = pl.pallas_call(
        contextnet_kernel,
        out_shape=jax.ShapeDtypeStruct((n_pad, CTX_PAD), jnp.float32),
        grid=grid,
        in_specs=[
            row_spec(sd),                          # x
            row_spec(2),                           # nodetype features
            row_spec(1),                           # node indices
            res_spec((sd, width)),                 # fused W1 (x rows)
            res_spec((n_nodes_pad, width)),        # fused W1 (emb folded)
            res_spec((2, width)),                  # fused W1 (nodetype rows)
            res_spec((1, width)),                  # fused b1 = [bg | b1]
            res_spec((H_PAD, H_PAD)),              # W2
            res_spec((1, H_PAD)),                  # b2
            res_spec((H_PAD, CTX_PAD)),            # Wo
            res_spec((1, CTX_PAD)),                # bo
        ],
        out_specs=pl.BlockSpec((tile, CTX_PAD), lambda i: (i, 0)),
        compiler_params=pltpu.CompilerParams(
            dimension_semantics=("parallel",)),
        cost_estimate=pl.CostEstimate(
            flops=flops, transcendentals=transcendentals,
            bytes_accessed=bytes_accessed),
    )(x_p, nt_p, idx_p,
      packed["w1x"], packed["w1e"], packed["w1nt"], packed["b1"],
      packed["w2"], packed["b2"], packed["wo"], packed["bo"])

    return out_pad[:n, :ctx]


# ---------------------------------------------------------------------------
# Pure-JAX reference matching the PyTorch module semantics.
# ---------------------------------------------------------------------------
def contextnet_ref(params, x, node_input, nodetype_input):
    node_bias = jnp.take(params["emb"], node_input.astype(jnp.int32), axis=0)
    joined = jnp.concatenate([x, node_bias, nodetype_input], axis=-1)
    gate = jax.nn.sigmoid(joined @ params["wg"] + params["bg"])
    h = jnp.tanh(joined @ params["w1"] + params["b1"])
    h = jnp.tanh(h @ params["w2"] + params["b2"])
    out = h @ params["wo"] + params["bo"]
    return out * gate


if __name__ == "__main__":
    N = 8                 # graph nodes in the batch
    STATE_DIM = 32        # opt.state_dim
    NODE_BIAS_SIZE = 16   # opt.node_bias_size
    CONTEXT_DIM = 32      # opt.context_dim
    H_DIM = 32            # opt.context_out_net_h_size
    N_TOTAL_NODES = 20

    key = jax.random.PRNGKey(0)
    k_params, k_x, k_idx, k_nt = jax.random.split(key, 4)

    params = make_params(k_params, n_total_nodes=N_TOTAL_NODES,
                         state_dim=STATE_DIM, node_bias_size=NODE_BIAS_SIZE,
                         context_dim=CONTEXT_DIM, h_dim=H_DIM)
    # On v6e / v7x pass matmul_dtype=jnp.bfloat16 for full-rate MXU
    # (f32 kept here so the exactness check below is tight; f32 is also the
    # right choice on v5e).
    packed = pack_params(params, matmul_dtype=jnp.float32)

    x = jax.random.normal(k_x, (N, STATE_DIM), jnp.float32)
    node_input = jax.random.randint(k_idx, (N,), 0, N_TOTAL_NODES, jnp.int32)
    nodetype_input = jax.random.normal(k_nt, (N, 2), jnp.float32)

    out = contextnet_forward(packed, x, node_input, nodetype_input)
    out = jax.block_until_ready(out)
    ref = contextnet_ref(params, x, node_input, nodetype_input)
    assert out.shape == (N, CONTEXT_DIM)
    assert jnp.allclose(out, ref, atol=1e-4, rtol=1e-4), "mismatch (small case)"

    # Second check: exercises multi-step grid + row padding/masking path.
    N2 = 200
    k2x, k2i, k2n = jax.random.split(jax.random.PRNGKey(1), 3)
    x2 = jax.random.normal(k2x, (N2, STATE_DIM), jnp.float32)
    idx2 = jax.random.randint(k2i, (N2,), 0, N_TOTAL_NODES, jnp.int32)
    nt2 = jax.random.normal(k2n, (N2, 2), jnp.float32)
    out2 = jax.block_until_ready(
        contextnet_forward(packed, x2, idx2, nt2, tile_rows=64))
    ref2 = contextnet_ref(params, x2, idx2, nt2)
    assert out2.shape == (N2, CONTEXT_DIM)
    assert jnp.allclose(out2, ref2, atol=1e-4, rtol=1e-4), "mismatch (gridded case)"

    print("KERNEL_OK")
</pallas_src>

<mosaic_0001>
module attributes {stable_mosaic.version = 11 : i64} {
  func.func @contextnet_kernel(%arg0: i32, %arg1: memref<8x32xf32, #tpu.memory_space<vmem>>, %arg2: memref<8x2xf32, #tpu.memory_space<vmem>>, %arg3: memref<8x1xi32, #tpu.memory_space<vmem>>, %arg4: memref<32x256xf32, #tpu.memory_space<vmem>>, %arg5: memref<128x256xf32, #tpu.memory_space<vmem>>, %arg6: memref<2x256xf32, #tpu.memory_space<vmem>>, %arg7: memref<1x256xf32, #tpu.memory_space<vmem>>, %arg8: memref<128x128xf32, #tpu.memory_space<vmem>>, %arg9: memref<1x128xf32, #tpu.memory_space<vmem>>, %arg10: memref<128x128xf32, #tpu.memory_space<vmem>>, %arg11: memref<1x128xf32, #tpu.memory_space<vmem>>, %arg12: memref<8x128xf32, #tpu.memory_space<vmem>>) attributes {dimension_semantics = [#tpu.dimension_semantics<parallel>], iteration_bounds = array<i64: 1>, scalar_prefetch = 0 : i64, scratch_operands = 0 : i64, tpu.core_type = #tpu.core_type<tc>, window_params = [{transform_indices = @transform_0, window_bounds = array<i64: 8, 32>}, {transform_indices = @transform_1, window_bounds = array<i64: 8, 2>}, {transform_indices = @transform_2, window_bounds = array<i64: 8, 1>}, {pipeline_mode = #tpu.pipeline_mode<synchronous>, transform_indices = @transform_3, window_bounds = array<i64: 32, 256>}, {pipeline_mode = #tpu.pipeline_mode<synchronous>, transform_indices = @transform_4, window_bounds = array<i64: 128, 256>}, {pipeline_mode = #tpu.pipeline_mode<synchronous>, transform_indices = @transform_5, window_bounds = array<i64: 2, 256>}, {pipeline_mode = #tpu.pipeline_mode<synchronous>, transform_indices = @transform_6, window_bounds = array<i64: 1, 256>}, {pipeline_mode = #tpu.pipeline_mode<synchronous>, transform_indices = @transform_7, window_bounds = array<i64: 128, 128>}, {pipeline_mode = #tpu.pipeline_mode<synchronous>, transform_indices = @transform_8, window_bounds = array<i64: 1, 128>}, {pipeline_mode = #tpu.pipeline_mode<synchronous>, transform_indices = @transform_9, window_bounds = array<i64: 128, 128>}, {pipeline_mode = #tpu.pipeline_mode<synchronous>, transform_indices = @transform_10, window_bounds = array<i64: 1, 128>}, {transform_indices = @transform_11, window_bounds = array<i64: 8, 128>}]} {
    %c0 = arith.constant 0 : index
    %c0_0 = arith.constant 0 : index
    %0 = vector.load %arg1[%c0, %c0_0] : memref<8x32xf32, #tpu.memory_space<vmem>>, vector<8x32xf32>
    %c0_1 = arith.constant 0 : index
    %c0_2 = arith.constant 0 : index
    %1 = vector.load %arg2[%c0_1, %c0_2] : memref<8x2xf32, #tpu.memory_space<vmem>>, vector<8x2xf32>
    %c0_3 = arith.constant 0 : index
    %c0_4 = arith.constant 0 : index
    %2 = vector.load %arg4[%c0_3, %c0_4] : memref<32x256xf32, #tpu.memory_space<vmem>>, vector<32x256xf32>
    %cst = arith.constant dense<0.000000e+00> : vector<8x256xf32>
    %3 = tpu.matmul %0, %2, %cst {dimension_numbers = #tpu.dot_dimension_numbers<[1], [0], [0], [1], [0, 0, 1, 1], [], []>} : vector<8x32xf32>, vector<32x256xf32>, vector<8x256xf32> -> vector<8x256xf32>
    %4 = tpu.iota {dimensions = array<i32: 1>} : vector<8x128xi32>
    %c0_5 = arith.constant 0 : index
    %c0_6 = arith.constant 0 : index
    %5 = vector.load %arg3[%c0_5, %c0_6] : memref<8x1xi32, #tpu.memory_space<vmem>>, vector<8x1xi32>
    %6 = vector.broadcast %5 : vector<8x1xi32> to vector<8x128xi32>
    %7 = arith.cmpi eq, %6, %4 : vector<8x128xi32>
    %8 = arith.extui %7 : vector<8x128xi1> to vector<8x128xi32>
    %9 = arith.sitofp %8 : vector<8x128xi32> to vector<8x128xf32>
    %c0_7 = arith.constant 0 : index
    %c0_8 = arith.constant 0 : index
    %10 = vector.load %arg5[%c0_7, %c0_8] : memref<128x256xf32, #tpu.memory_space<vmem>>, vector<128x256xf32>
    %cst_9 = arith.constant dense<0.000000e+00> : vector<8x256xf32>
    %11 = tpu.matmul %9, %10, %cst_9 {dimension_numbers = #tpu.dot_dimension_numbers<[1], [0], [0], [1], [0, 0, 1, 1], [], []>} : vector<8x128xf32>, vector<128x256xf32>, vector<8x256xf32> -> vector<8x256xf32>
    %12 = arith.addf %3, %11 : vector<8x256xf32>
    %c0_10 = arith.constant 0 : index
    %c0_11 = arith.constant 0 : index
    %13 = vector.load %arg6[%c0_10, %c0_11] : memref<2x256xf32, #tpu.memory_space<vmem>>, vector<2x256xf32>
    %14 = vector.extract_strided_slice %1 {offsets = [0, 0], sizes = [8, 1], strides = [1, 1]} : vector<8x2xf32> to vector<8x1xf32>
    %15 = vector.extract_strided_slice %13 {offsets = [0, 0], sizes = [1, 256], strides = [1, 1]} : vector<2x256xf32> to vector<1x256xf32>
    %16 = vector.broadcast %14 : vector<8x1xf32> to vector<8x256xf32>
    %17 = vector.broadcast %15 : vector<1x256xf32> to vector<8x256xf32>
    %18 = arith.mulf %16, %17 : vector<8x256xf32>
    %19 = arith.addf %12, %18 : vector<8x256xf32>
    %20 = vector.extract_strided_slice %1 {offsets = [0, 1], sizes = [8, 1], strides = [1, 1]} : vector<8x2xf32> to vector<8x1xf32>
    %21 = vector.extract_strided_slice %13 {offsets = [1, 0], sizes = [1, 256], strides = [1, 1]} : vector<2x256xf32> to vector<1x256xf32>
    %22 = vector.broadcast %20 : vector<8x1xf32> to vector<8x256xf32>
    %23 = vector.broadcast %21 : vector<1x256xf32> to vector<8x256xf32>
    %24 = arith.mulf %22, %23 : vector<8x256xf32>
    %25 = arith.addf %19, %24 : vector<8x256xf32>
    %c0_12 = arith.constant 0 : index
    %c0_13 = arith.constant 0 : index
    %26 = vector.load %arg7[%c0_12, %c0_13] : memref<1x256xf32, #tpu.memory_space<vmem>>, vector<1x256xf32>
    %27 = vector.broadcast %26 : vector<1x256xf32> to vector<8x256xf32>
    %28 = arith.addf %25, %27 : vector<8x256xf32>
    %29 = vector.extract_strided_slice %28 {offsets = [0, 0], sizes = [8, 128], strides = [1, 1]} : vector<8x256xf32> to vector<8x128xf32>
    %30 = arith.negf %29 : vector<8x128xf32>
    %31 = math.exp %30 : vector<8x128xf32>
    %cst_14 = arith.constant 1.000000e+00 : f32
    %32 = vector.broadcast %cst_14 : f32 to vector<8x128xf32>
    %33 = arith.addf %32, %31 : vector<8x128xf32>
    %34 = arith.divf %32, %33 : vector<8x128xf32>
    %35 = vector.extract_strided_slice %28 {offsets = [0, 128], sizes = [8, 128], strides = [1, 1]} : vector<8x256xf32> to vector<8x128xf32>
    %36 = math.tanh %35 : vector<8x128xf32>
    %c0_15 = arith.constant 0 : index
    %c0_16 = arith.constant 0 : index
    %37 = vector.load %arg8[%c0_15, %c0_16] : memref<128x128xf32, #tpu.memory_space<vmem>>, vector<128x128xf32>
    %cst_17 = arith.constant dense<0.000000e+00> : vector<8x128xf32>
    %38 = tpu.matmul %36, %37, %cst_17 {dimension_numbers = #tpu.dot_dimension_numbers<[1], [0], [0], [1], [0, 0, 1, 1], [], []>} : vector<8x128xf32>, vector<128x128xf32>, vector<8x128xf32> -> vector<8x128xf32>
    %c0_18 = arith.constant 0 : index
    %c0_19 = arith.constant 0 : index
    %39 = vector.load %arg9[%c0_18, %c0_19] : memref<1x128xf32, #tpu.memory_space<vmem>>, vector<1x128xf32>
    %40 = vector.broadcast %39 : vector<1x128xf32> to vector<8x128xf32>
    %41 = arith.addf %38, %40 : vector<8x128xf32>
    %42 = math.tanh %41 : vector<8x128xf32>
    %c0_20 = arith.constant 0 : index
    %c0_21 = arith.constant 0 : index
    %43 = vector.load %arg10[%c0_20, %c0_21] : memref<128x128xf32, #tpu.memory_space<vmem>>, vector<128x128xf32>
    %cst_22 = arith.constant dense<0.000000e+00> : vector<8x128xf32>
    %44 = tpu.matmul %42, %43, %cst_22 {dimension_numbers = #tpu.dot_dimension_numbers<[1], [0], [0], [1], [0, 0, 1, 1], [], []>} : vector<8x128xf32>, vector<128x128xf32>, vector<8x128xf32> -> vector<8x128xf32>
    %c0_23 = arith.constant 0 : index
    %c0_24 = arith.constant 0 : index
    %45 = vector.load %arg11[%c0_23, %c0_24] : memref<1x128xf32, #tpu.memory_space<vmem>>, vector<1x128xf32>
    %46 = vector.broadcast %45 : vector<1x128xf32> to vector<8x128xf32>
    %47 = arith.addf %44, %46 : vector<8x128xf32>
    %48 = arith.mulf %47, %34 : vector<8x128xf32>
    %c0_25 = arith.constant 0 : index
    %c0_26 = arith.constant 0 : index
    %49 = vector.load %arg12[%c0_25, %c0_26] : memref<8x128xf32, #tpu.memory_space<vmem>>, vector<8x128xf32>
    tpu.vector_store %arg12[%c0_25, %c0_26], %48 {strides = array<i32>} : memref<8x128xf32, #tpu.memory_space<vmem>>, vector<8x128xf32>,
    return
  }
  func.func @transform_0(%arg0: i32) -> (i32, i32) {
    %c0_i32 = arith.constant 0 : i32
    %c0_i32_0 = arith.constant 0 : i32
    return %arg0, %c0_i32 : i32, i32
  }
  func.func @transform_1(%arg0: i32) -> (i32, i32) {
    %c0_i32 = arith.constant 0 : i32
    %c0_i32_0 = arith.constant 0 : i32
    return %arg0, %c0_i32 : i32, i32
  }
  func.func @transform_2(%arg0: i32) -> (i32, i32) {
    %c0_i32 = arith.constant 0 : i32
    %c0_i32_0 = arith.constant 0 : i32
    return %arg0, %c0_i32 : i32, i32
  }
  func.func @transform_3(%arg0: i32) -> (i32, i32) {
    %c0_i32 = arith.constant 0 : i32
    %c0_i32_0 = arith.constant 0 : i32
    %c0_i32_1 = arith.constant 0 : i32
    return %c0_i32, %c0_i32_0 : i32, i32
  }
  func.func @transform_4(%arg0: i32) -> (i32, i32) {
    %c0_i32 = arith.constant 0 : i32
    %c0_i32_0 = arith.constant 0 : i32
    %c0_i32_1 = arith.constant 0 : i32
    return %c0_i32, %c0_i32_0 : i32, i32
  }
  func.func @transform_5(%arg0: i32) -> (i32, i32) {
    %c0_i32 = arith.constant 0 : i32
    %c0_i32_0 = arith.constant 0 : i32
    %c0_i32_1 = arith.constant 0 : i32
    return %c0_i32, %c0_i32_0 : i32, i32
  }
  func.func @transform_6(%arg0: i32) -> (i32, i32) {
    %c0_i32 = arith.constant 0 : i32
    %c0_i32_0 = arith.constant 0 : i32
    %c0_i32_1 = arith.constant 0 : i32
    return %c0_i32, %c0_i32_0 : i32, i32
  }
  func.func @transform_7(%arg0: i32) -> (i32, i32) {
    %c0_i32 = arith.constant 0 : i32
    %c0_i32_0 = arith.constant 0 : i32
    %c0_i32_1 = arith.constant 0 : i32
    return %c0_i32, %c0_i32_0 : i32, i32
  }
  func.func @transform_8(%arg0: i32) -> (i32, i32) {
    %c0_i32 = arith.constant 0 : i32
    %c0_i32_0 = arith.constant 0 : i32
    %c0_i32_1 = arith.constant 0 : i32
    return %c0_i32, %c0_i32_0 : i32, i32
  }
  func.func @transform_9(%arg0: i32) -> (i32, i32) {
    %c0_i32 = arith.constant 0 : i32
    %c0_i32_0 = arith.constant 0 : i32
    %c0_i32_1 = arith.constant 0 : i32
    return %c0_i32, %c0_i32_0 : i32, i32
  }
  func.func @transform_10(%arg0: i32) -> (i32, i32) {
    %c0_i32 = arith.constant 0 : i32
    %c0_i32_0 = arith.constant 0 : i32
    %c0_i32_1 = arith.constant 0 : i32
    return %c0_i32, %c0_i32_0 : i32, i32
  }
  func.func @transform_11(%arg0: i32) -> (i32, i32) {
    %c0_i32 = arith.constant 0 : i32
    %c0_i32_0 = arith.constant 0 : i32
    return %arg0, %c0_i32 : i32, i32
  }
}

</mosaic_0001>

<llo_original>
// kernel: tpu_custom_call.1
$region0: #{tpu_custom_call.1}
  #allocation0 [shape = 'u32[]', space=smem, size = 0x4, offset = 0x4, fixed_abs, tag = 'smem constant byte address 0x4 - core index']
  #allocation1 [shape = 'u32[72,128]{1,0:T(1,128)}', space=vmem, size = 0x9000, scoped, tag = 'internal scratch']
  %s0 = inlined_call_operand.vmem [shape: f32[8,32], index: 0, kind: input, shape index: {}]
  %s1 = inlined_call_operand.vmem [shape: f32[8,2], index: 1, kind: input, shape index: {}]
  %s2 = inlined_call_operand.vmem [shape: s32[8,1], index: 2, kind: input, shape index: {}]
  %s3 = inlined_call_operand.hbm [shape: f32[32,256], index: 3, kind: input, shape index: {}]
  %s4 = inlined_call_operand.hbm [shape: f32[128,256], index: 4, kind: input, shape index: {}]
  %s5 = inlined_call_operand.vmem [shape: f32[2,256], index: 5, kind: input, shape index: {}]
  %s6 = inlined_call_operand.vmem [shape: f32[1,256], index: 6, kind: input, shape index: {}]
  %s7 = inlined_call_operand.hbm [shape: f32[128,128], index: 7, kind: input, shape index: {}]
  %s8 = inlined_call_operand.vmem [shape: f32[1,128], index: 8, kind: input, shape index: {}]
  %s9 = inlined_call_operand.hbm [shape: f32[128,128], index: 9, kind: input, shape index: {}]
  %s10 = inlined_call_operand.vmem [shape: f32[1,128], index: 10, kind: input, shape index: {}]
  %s11 = inlined_call_operand.hbm [shape: f32[8,128], index: 11, kind: output, shape index: {}]
  %s12 = sld [smem:[#allocation0]]
  $region70: #{tpu_custom_call.1} parent=0
    _
  %s14 = ssub.s32 1, %s12
  %s15 = scalar_select 0, %s14, %s12
  $region1: #{tpu_custom_call.1} parent=0
    #allocation2 [shape = 'u8[32768]{0}', space=vmem, size = 0x8000, scoped, tag = 'input window, operand 3, single buffered']
    #allocation3 [shape = 's32[1]{0}', space=sflag, size = 0x4, scoped, tag = 'scoped memory for tpu_custom_call.1']
    #allocation4 [shape = 's32[1]{0}', space=sflag, size = 0x4, scoped, tag = 'scoped memory for tpu_custom_call.1']
    #allocation5 [shape = 'u8[131072]{0}', space=vmem, size = 0x20000, scoped, tag = 'input window, operand 4, single buffered']
    #allocation6 [shape = 's32[1]{0}', space=sflag, size = 0x4, scoped, tag = 'scoped memory for tpu_custom_call.1']
    #allocation7 [shape = 'u8[65536]{0}', space=vmem, size = 0x10000, scoped, tag = 'input window, operand 7, single buffered']
    #allocation8 [shape = 'u8[65536]{0}', space=vmem, size = 0x10000, scoped, tag = 'input window, operand 9, single buffered']
    #allocation9 [shape = 's32[1]{0}', space=sflag, size = 0x4, scoped, tag = 'scoped memory for tpu_custom_call.1']
    #allocation10 [shape = 'u8[4096]{0}', space=vmem, size = 0x1000, scoped, tag = 'output window, operand 0, single buffered']
    %16 = vsyncpa [#allocation3], 0
    %17 = vsyncpa [#allocation6], 0
    %18 = vsyncpa [#allocation9], 0
    %19 = vsyncpa [#allocation4], 0
    // Predicated region
    $region2: #{tpu_custom_call.1} parent=1 // pred_check
      _
    $region3: #{tpu_custom_call.1} parent=1 // pred_check_branch
      %21 = sbr.rel (0) target = $region5
    $region4: #{tpu_custom_call.1} parent=1 // pred_region
      _
    $region5: #{tpu_custom_call.1} parent=1 // pred_fallthru
      _
    // Predicated region
    $region6: #{tpu_custom_call.1} parent=1 // pred_check
      _
    $region7: #{tpu_custom_call.1} parent=1 // pred_check_branch
      %23 = sbr.rel (0) target = $region9
    $region8: #{tpu_custom_call.1} parent=1 // pred_region
      _
    $region9: #{tpu_custom_call.1} parent=1 // pred_fallthru
      _
    // Predicated region
    $region10: #{tpu_custom_call.1} parent=1 // pred_check
      _
    $region11: #{tpu_custom_call.1} parent=1 // pred_check_branch
      %25 = sbr.rel (0) target = $region13
    $region12: #{tpu_custom_call.1} parent=1 // pred_region
      _
    $region13: #{tpu_custom_call.1} parent=1 // pred_fallthru
      _
    // Predicated region
    $region14: #{tpu_custom_call.1} parent=1 // pred_check
      _
    $region15: #{tpu_custom_call.1} parent=1 // pred_check_branch
      %27 = sbr.rel (0) target = $region17
    $region16: #{tpu_custom_call.1} parent=1 // pred_region
      %29 = vsyncadd [#allocation3], 0
      %s30 = sshll.u32 %s3, 4
      %s31 = int_to_ptr.hbm [resolvable:$true] %s30
      %s32 = sshll.u32 [#allocation2], 4
      %s33 = int_to_ptr.vmem [resolvable:$true] %s32
      %38 = dma.hbm_to_vmem [thread:$0]  %s31, 1024, %s33, [#allocation3], 256, 256, 16
    $region17: #{tpu_custom_call.1} parent=1 // pred_fallthru
      _
    // Predicated region
    $region18: #{tpu_custom_call.1} parent=1 // pred_check
      _
    $region19: #{tpu_custom_call.1} parent=1 // pred_check_branch
      %40 = sbr.rel (0) target = $region21
    $region20: #{tpu_custom_call.1} parent=1 // pred_region
      %42 = vsyncadd [#allocation6], 0
      %s43 = sshll.u32 %s4, 4
      %s44 = int_to_ptr.hbm [resolvable:$true] %s43
      %s45 = sshll.u32 [#allocation5], 4
      %s46 = int_to_ptr.vmem [resolvable:$true] %s45
      %51 = dma.hbm_to_vmem [thread:$0]  %s44, 4096, %s46, [#allocation6], 256, 256, 16
    $region21: #{tpu_custom_call.1} parent=1 // pred_fallthru
      _
    // Predicated region
    $region22: #{tpu_custom_call.1} parent=1 // pred_check
      _
    $region23: #{tpu_custom_call.1} parent=1 // pred_check_branch
      %53 = sbr.rel (0) target = $region25
    $region24: #{tpu_custom_call.1} parent=1 // pred_region
      _
    $region25: #{tpu_custom_call.1} parent=1 // pred_fallthru
      _
    // Predicated region
    $region26: #{tpu_custom_call.1} parent=1 // pred_check
      _
    $region27: #{tpu_custom_call.1} parent=1 // pred_check_branch
      %55 = sbr.rel (0) target = $region29
    $region28: #{tpu_custom_call.1} parent=1 // pred_region
      _
    $region29: #{tpu_custom_call.1} parent=1 // pred_fallthru
      _
    // Predicated region
    $region30: #{tpu_custom_call.1} parent=1 // pred_check
      _
    $region31: #{tpu_custom_call.1} parent=1 // pred_check_branch
      %57 = sbr.rel (0) target = $region33
    $region32: #{tpu_custom_call.1} parent=1 // pred_region
      %59 = vsyncadd [#allocation6], 0
      %s60 = sshll.u32 %s7, 4
      %s61 = int_to_ptr.hbm [resolvable:$true] %s60
      %s62 = sshll.u32 [#allocation7], 4
      %s63 = int_to_ptr.vmem [resolvable:$true] %s62
      %68 = dma.hbm_to_vmem [thread:$0]  %s61, 2048, %s63, [#allocation6], 128, 128, 8
    $region33: #{tpu_custom_call.1} parent=1 // pred_fallthru
      _
    // Predicated region
    $region34: #{tpu_custom_call.1} parent=1 // pred_check
      _
    $region35: #{tpu_custom_call.1} parent=1 // pred_check_branch
      %70 = sbr.rel (0) target = $region37
    $region36: #{tpu_custom_call.1} parent=1 // pred_region
      _
    $region37: #{tpu_custom_call.1} parent=1 // pred_fallthru
      _
    // Predicated region
    $region38: #{tpu_custom_call.1} parent=1 // pred_check
      _
    $region39: #{tpu_custom_call.1} parent=1 // pred_check_branch
      %72 = sbr.rel (0) target = $region41
    $region40: #{tpu_custom_call.1} parent=1 // pred_region
      %74 = vsyncadd [#allocation9], 0
      %s75 = sshll.u32 %s9, 4
      %s76 = int_to_ptr.hbm [resolvable:$true] %s75
      %s77 = sshll.u32 [#allocation8], 4
      %s78 = int_to_ptr.vmem [resolvable:$true] %s77
      %83 = dma.hbm_to_vmem [thread:$0]  %s76, 2048, %s78, [#allocation9], 128, 128, 8
    $region41: #{tpu_custom_call.1} parent=1 // pred_fallthru
      _
    // Predicated region
    $region42: #{tpu_custom_call.1} parent=1 // pred_check
      _
    $region43: #{tpu_custom_call.1} parent=1 // pred_check_branch
      %85 = sbr.rel (0) target = $region45
    $region44: #{tpu_custom_call.1} parent=1 // pred_region
      _
    $region45: #{tpu_custom_call.1} parent=1 // pred_fallthru
      _
    // Predicated region
    $region46: #{tpu_custom_call.1} parent=1 // pred_check
      _
    $region47: #{tpu_custom_call.1} parent=1 // pred_check_branch
      %87 = sbr.rel (0) target = $region49
    $region48: #{tpu_custom_call.1} parent=1 // pred_region
      %89 = dma.done [#allocation3], 1024
    $region49: #{tpu_custom_call.1} parent=1 // pred_fallthru
      _
    // Predicated region
    $region50: #{tpu_custom_call.1} parent=1 // pred_check
      _
    $region51: #{tpu_custom_call.1} parent=1 // pred_check_branch
      %91 = sbr.rel (0) target = $region53
    $region52: #{tpu_custom_call.1} parent=1 // pred_region
      %93 = dma.done [#allocation6], 4096
    $region53: #{tpu_custom_call.1} parent=1 // pred_fallthru
      _
    // Predicated region
    $region54: #{tpu_custom_call.1} parent=1 // pred_check
      _
    $region55: #{tpu_custom_call.1} parent=1 // pred_check_branch
      %95 = sbr.rel (0) target = $region57
    $region56: #{tpu_custom_call.1} parent=1 // pred_region
      %97 = dma.done [#allocation6], 2048
    $region57: #{tpu_custom_call.1} parent=1 // pred_fallthru
      _
    // Predicated region
    $region58: #{tpu_custom_call.1} parent=1 // pred_check
      _
    $region59: #{tpu_custom_call.1} parent=1 // pred_check_branch
      %99 = sbr.rel (0) target = $region61
    $region60: #{tpu_custom_call.1} parent=1 // pred_region
      %101 = dma.done [#allocation9], 2048
    $region61: #{tpu_custom_call.1} parent=1 // pred_fallthru
      _
    %v102 = vld [vmem:[%s0] sm:$0xff]
    %v103 = vld [vmem:[%s1] sm:$0xff]
    %v104 = vld [vmem:[#allocation2] sm:$0xff]
    %v105 = vld [vmem:[#allocation2 + $0x8] sm:$0xff]
    %v106 = vld [vmem:[#allocation2 + $0x10] sm:$0xff]
    %v107 = vld [vmem:[#allocation2 + $0x18] sm:$0xff]
    %v108 = vld [vmem:[#allocation2 + $0x20] sm:$0xff]
    %v109 = vld [vmem:[#allocation2 + $0x28] sm:$0xff]
    %v110 = vld [vmem:[#allocation2 + $0x30] sm:$0xff]
    %v111 = vld [vmem:[#allocation2 + $0x38] sm:$0xff]
    %v112 = vlaneseq
    %v113 = vand.u32 %v112, 127
    %v114 = vld [vmem:[%s2] sm:$0xff]
    %115 = vset.pattern.permute.xlu0 0
    %116 = vperm.xlu0 %115, %v114
    %v117 = vpop.permute.xlu0 %116
    %vm118 = vcmp.eq.s32.totalorder %v117, %v113
    %v119 = vsel %vm118, 1, 0
    %v120 = vcvt.s32.f32 %v119
    %v121 = vld [vmem:[#allocation5] sm:$0xff]
    %v122 = vld [vmem:[#allocation5 + $0x8] sm:$0xff]
    %v123 = vld [vmem:[#allocation5 + $0x10] sm:$0xff]
    %v124 = vld [vmem:[#allocation5 + $0x18] sm:$0xff]
    %v125 = vld [vmem:[#allocation5 + $0x20] sm:$0xff]
    %v126 = vld [vmem:[#allocation5 + $0x28] sm:$0xff]
    %v127 = vld [vmem:[#allocation5 + $0x30] sm:$0xff]
    %v128 = vld [vmem:[#allocation5 + $0x38] sm:$0xff]
    %v129 = vld [vmem:[#allocation5 + $0x40] sm:$0xff]
    %v130 = vld [vmem:[#allocation5 + $0x48] sm:$0xff]
    %v131 = vld [vmem:[#allocation5 + $0x50] sm:$0xff]
    %v132 = vld [vmem:[#allocation5 + $0x58] sm:$0xff]
    %v133 = vld [vmem:[#allocation5 + $0x60] sm:$0xff]
    %v134 = vld [vmem:[#allocation5 + $0x68] sm:$0xff]
    %v135 = vld [vmem:[#allocation5 + $0x70] sm:$0xff]
    %v136 = vld [vmem:[#allocation5 + $0x78] sm:$0xff]
    %v137 = vld [vmem:[#allocation5 + $0x80] sm:$0xff]
    %v138 = vld [vmem:[#allocation5 + $0x88] sm:$0xff]
    %v139 = vld [vmem:[#allocation5 + $0x90] sm:$0xff]
    %v140 = vld [vmem:[#allocation5 + $0x98] sm:$0xff]
    %v141 = vld [vmem:[#allocation5 + $0xa0] sm:$0xff]
    %v142 = vld [vmem:[#allocation5 + $0xa8] sm:$0xff]
    %v143 = vld [vmem:[#allocation5 + $0xb0] sm:$0xff]
    %v144 = vld [vmem:[#allocation5 + $0xb8] sm:$0xff]
    %v145 = vld [vmem:[#allocation5 + $0xc0] sm:$0xff]
    %v146 = vld [vmem:[#allocation5 + $0xc8] sm:$0xff]
    %v147 = vld [vmem:[#allocation5 + $0xd0] sm:$0xff]
    %v148 = vld [vmem:[#allocation5 + $0xd8] sm:$0xff]
    %v149 = vld [vmem:[#allocation5 + $0xe0] sm:$0xff]
    %v150 = vld [vmem:[#allocation5 + $0xe8] sm:$0xff]
    %v151 = vld [vmem:[#allocation5 + $0xf0] sm:$0xff]
    %v152 = vld [vmem:[#allocation5 + $0xf8] sm:$0xff]
    %153 = vmatpush.msra.mxu0 %v151
    %154 = vmatpush.msra.mxu0 %v149
    %155 = vmatpush.msra.mxu0 %v147
    %156 = vmatpush.msra.mxu0 %v145
    %157 = vmatpush.msra.mxu0 %v143
    %158 = vmatpush.msra.mxu0 %v141
    %159 = vmatpush.msra.mxu0 %v139
    %160 = vmatpush.msra.mxu0 %v137
    %161 = vmatpush.msra.mxu0 %v135
    %162 = vmatpush.msra.mxu0 %v133
    %163 = vmatpush.msra.mxu0 %v131
    %164 = vmatpush.msra.mxu0 %v129
    %165 = vmatpush.msra.mxu0 %v127
    %166 = vmatpush.msra.mxu0 %v125
    %167 = vmatpush.msra.mxu0 %v123
    %168 = vmatpush.msra.mxu0 %v121
    %169 = vmatmul.f32.gmra.mxu0 %v120
    %v170 = vpop.f32.mrf.mxu0
    %v171 = vadd.f32 0.0, %v170
    %172 = vdwg.mxu0
    %173 = vmatpush.msra.mxu0 %v152
    %174 = vmatpush.msra.mxu0 %v150
    %175 = vmatpush.msra.mxu0 %v148
    %176 = vmatpush.msra.mxu0 %v146
    %177 = vmatpush.msra.mxu0 %v144
    %178 = vmatpush.msra.mxu0 %v142
    %179 = vmatpush.msra.mxu0 %v140
    %180 = vmatpush.msra.mxu0 %v138
    %181 = vmatpush.msra.mxu0 %v136
    %182 = vmatpush.msra.mxu0 %v134
    %183 = vmatpush.msra.mxu0 %v132
    %184 = vmatpush.msra.mxu0 %v130
    %185 = vmatpush.msra.mxu0 %v128
    %186 = vmatpush.msra.mxu0 %v126
    %187 = vmatpush.msra.mxu0 %v124
    %188 = vmatpush.msra.mxu0 %v122
    %189 = vmatmul.f32.gmra.mxu0 %v120
    %v190 = vpop.f32.mrf.mxu0
    %v191 = vadd.f32 0.0, %v190
    %192 = vdwg.mxu0
    %vm193 = vcmask 261120
    %v195 = vsel %vm193, %v102, 0
    %197 = vmatpush.msra.mxu0 0.0
    %198 = vmatpush.msra.mxu0 0.0
    %199 = vmatpush.msra.mxu0 0.0
    %200 = vmatpush.msra.mxu0 0.0
    %201 = vmatpush.msra.mxu0 0.0
    %202 = vmatpush.msra.mxu0 0.0
    %203 = vmatpush.msra.mxu0 0.0
    %204 = vmatpush.msra.mxu0 0.0
    %205 = vmatpush.msra.mxu0 0.0
    %206 = vmatpush.msra.mxu0 0.0
    %207 = vmatpush.msra.mxu0 0.0
    %208 = vmatpush.msra.mxu0 0.0
    %209 = vmatpush.msra.mxu0 %v110
    %210 = vmatpush.msra.mxu0 %v108
    %211 = vmatpush.msra.mxu0 %v106
    %212 = vmatpush.msra.mxu0 %v104
    %213 = vmatmul.f32.gmra.mxu0 %v195
    %v214 = vpop.f32.mrf.mxu0
    %v215 = vadd.f32 %v171, %v214
    %216 = vdwg.mxu0
    %217 = vmatpush.msra.mxu0 0.0
    %218 = vmatpush.msra.mxu0 0.0
    %219 = vmatpush.msra.mxu0 0.0
    %220 = vmatpush.msra.mxu0 0.0
    %221 = vmatpush.msra.mxu0 0.0
    %222 = vmatpush.msra.mxu0 0.0
    %223 = vmatpush.msra.mxu0 0.0
    %224 = vmatpush.msra.mxu0 0.0
    %225 = vmatpush.msra.mxu0 0.0
    %226 = vmatpush.msra.mxu0 0.0
    %227 = vmatpush.msra.mxu0 0.0
    %228 = vmatpush.msra.mxu0 0.0
    %229 = vmatpush.msra.mxu0 %v111
    %230 = vmatpush.msra.mxu0 %v109
    %231 = vmatpush.msra.mxu0 %v107
    %232 = vmatpush.msra.mxu0 %v105
    %233 = vmatmul.f32.gmra.mxu0 %v195
    %v234 = vpop.f32.mrf.mxu0
    %v235 = vadd.f32 %v191, %v234
    %236 = vdwg.mxu0
    %v237 = vld [vmem:[%s5] sm:$0xf]
    %239 = vset.pattern.permute.xlu0 0
    %240 = vperm.xlu0 %239, %v103
    %v241 = vpop.permute.xlu0 %240
    %v244 = vperm.slane %v237, 0
    %v245 = vperm.slane %v237, 2
    %v248 = vperm.slane %v244, 0
    %v249 = vperm.slane %v245, 0
    %v250 = vmul.f32 %v241, %v248
    %v251 = vmul.f32 %v241, %v249
    %v252 = vadd.f32 %v215, %v250
    %v253 = vadd.f32 %v235, %v251
    %254 = vset.pattern.permute.xlu0 1
    %255 = vperm.xlu0 %254, %v103
    %v256 = vpop.permute.xlu0 %255
    %v258 = vperm.slane %v237, 1
    %v259 = vperm.slane %v237, 3
    %v262 = vperm.slane %v258, 1
    %v263 = vperm.slane %v259, 1
    %v264 = vmul.f32 %v256, %v262
    %v265 = vmul.f32 %v256, %v263
    %v266 = vadd.f32 %v252, %v264
    %v267 = vadd.f32 %v253, %v265
    %v268 = vld [vmem:[%s6] sm:$0x3]
    %v270 = vperm.slane %v268, 0
    %v271 = vperm.slane %v268, 1
    %v274 = vadd.f32 %v266, %v270
    %v275 = vadd.f32 %v267, %v271
    %v276 = vxor.u32 %v274, 2147483648
    %v277 = vmul.f32 %v276, 1.442695
    %v278 = vpow.pop %v277
    %v279 = vadd.f32 %v278, 1.0
    %v280 = vrcp.pop %v279
    %v281 = vmul.f32 %v279, %v280
    %v282 = vsub.f32 1.0, %v281
    %v283 = vmul.f32 %v280, %v282
    %v284 = vadd.f32 %v280, %v283
    %vm285 = vweird.f32 %v279
    %vm286 = vweird.f32 %v280
    %vm287 = vmor %vm285, %vm286
    %v288 = vsel %vm287, %v280, %v284
    %v289 = vand.u32 2147483647, %v279
    %vm290 = vcmp.eq.f32.partialorder %v289, 8.507059e+37
    %v291 = vand.u32 %v279, 2147483648
    %v292 = vor.u32 1.1754944e-38, %v291
    %v293 = vsel %vm290, %v292, %v288
    %v294 = vmul.f32 1.0, %v293
    %v295 = vtanh.pop %v275
    %v296 = vld [vmem:[#allocation7] sm:$0xff]
    %v297 = vld [vmem:[#allocation7 + $0x8] sm:$0xff]
    %v298 = vld [vmem:[#allocation7 + $0x10] sm:$0xff]
    %v299 = vld [vmem:[#allocation7 + $0x18] sm:$0xff]
    %v300 = vld [vmem:[#allocation7 + $0x20] sm:$0xff]
    %v301 = vld [vmem:[#allocation7 + $0x28] sm:$0xff]
    %v302 = vld [vmem:[#allocation7 + $0x30] sm:$0xff]
    %v303 = vld [vmem:[#allocation7 + $0x38] sm:$0xff]
    %v304 = vld [vmem:[#allocation7 + $0x40] sm:$0xff]
    %v305 = vld [vmem:[#allocation7 + $0x48] sm:$0xff]
    %v306 = vld [vmem:[#allocation7 + $0x50] sm:$0xff]
    %v307 = vld [vmem:[#allocation7 + $0x58] sm:$0xff]
    %v308 = vld [vmem:[#allocation7 + $0x60] sm:$0xff]
    %v309 = vld [vmem:[#allocation7 + $0x68] sm:$0xff]
    %v310 = vld [vmem:[#allocation7 + $0x70] sm:$0xff]
    %v311 = vld [vmem:[#allocation7 + $0x78] sm:$0xff]
    %v312 = vld [vmem:[%s8] sm:$0x1]
    %v314 = vperm.slane %v312, 0
    %316 = vmatpush.msra.mxu0 %v311
    %317 = vmatpush.msra.mxu0 %v310
    %318 = vmatpush.msra.mxu0 %v309
    %319 = vmatpush.msra.mxu0 %v308
    %320 = vmatpush.msra.mxu0 %v307
    %321 = vmatpush.msra.mxu0 %v306
    %322 = vmatpush.msra.mxu0 %v305
    %323 = vmatpush.msra.mxu0 %v304
    %324 = vmatpush.msra.mxu0 %v303
    %325 = vmatpush.msra.mxu0 %v302
    %326 = vmatpush.msra.mxu0 %v301
    %327 = vmatpush.msra.mxu0 %v300
    %328 = vmatpush.msra.mxu0 %v299
    %329 = vmatpush.msra.mxu0 %v298
    %330 = vmatpush.msra.mxu0 %v297
    %331 = vmatpush.msra.mxu0 %v296
    %332 = vmatmul.f32.gmra.mxu0 %v295
    %v333 = vpop.f32.mrf.mxu0
    %v334 = vadd.f32 %v314, %v333
    %335 = vdwg.mxu0
    %v336 = vtanh.pop %v334
    %v337 = vld [vmem:[#allocation8] sm:$0xff]
    %v338 = vld [vmem:[#allocation8 + $0x8] sm:$0xff]
    %v339 = vld [vmem:[#allocation8 + $0x10] sm:$0xff]
    %v340 = vld [vmem:[#allocation8 + $0x18] sm:$0xff]
    %v341 = vld [vmem:[#allocation8 + $0x20] sm:$0xff]
    %v342 = vld [vmem:[#allocation8 + $0x28] sm:$0xff]
    %v343 = vld [vmem:[#allocation8 + $0x30] sm:$0xff]
    %v344 = vld [vmem:[#allocation8 + $0x38] sm:$0xff]
    %v345 = vld [vmem:[#allocation8 + $0x40] sm:$0xff]
    %v346 = vld [vmem:[#allocation8 + $0x48] sm:$0xff]
    %v347 = vld [vmem:[#allocation8 + $0x50] sm:$0xff]
    %v348 = vld [vmem:[#allocation8 + $0x58] sm:$0xff]
    %v349 = vld [vmem:[#allocation8 + $0x60] sm:$0xff]
    %v350 = vld [vmem:[#allocation8 + $0x68] sm:$0xff]
    %v351 = vld [vmem:[#allocation8 + $0x70] sm:$0xff]
    %v352 = vld [vmem:[#allocation8 + $0x78] sm:$0xff]
    %v353 = vld [vmem:[%s10] sm:$0x1]
    %v355 = vperm.slane %v353, 0
    %357 = vmatpush.msra.mxu0 %v352
    %358 = vmatpush.msra.mxu0 %v351
    %359 = vmatpush.msra.mxu0 %v350
    %360 = vmatpush.msra.mxu0 %v349
    %361 = vmatpush.msra.mxu0 %v348
    %362 = vmatpush.msra.mxu0 %v347
    %363 = vmatpush.msra.mxu0 %v346
    %364 = vmatpush.msra.mxu0 %v345
    %365 = vmatpush.msra.mxu0 %v344
    %366 = vmatpush.msra.mxu0 %v343
    %367 = vmatpush.msra.mxu0 %v342
    %368 = vmatpush.msra.mxu0 %v341
    %369 = vmatpush.msra.mxu0 %v340
    %370 = vmatpush.msra.mxu0 %v339
    %371 = vmatpush.msra.mxu0 %v338
    %372 = vmatpush.msra.mxu0 %v337
    %373 = vmatmul.f32.gmra.mxu0 %v336
    %v374 = vpop.f32.mrf.mxu0
    %v375 = vadd.f32 %v355, %v374
    %376 = vdwg.mxu0
    %v377 = vmul.f32 %v375, %v294
    %378 = vst [vmem:[#allocation10] sm:$0xff] %v377
    // Predicated region
    $region62: #{tpu_custom_call.1} parent=1 // pred_check
      _
    $region63: #{tpu_custom_call.1} parent=1 // pred_check_branch
      %380 = sbr.rel (0) target = $region65
    $region64: #{tpu_custom_call.1} parent=1 // pred_region
      %382 = vsyncadd [#allocation4], 0
      %s384 = sshll.u32 [#allocation10], 4
      %s385 = int_to_ptr.vmem [resolvable:$true] %s384
      %s386 = sshll.u32 %s11, 4
      %s387 = int_to_ptr.hbm [resolvable:$true] %s386
      %389 = dma.vmem_to_hbm [thread:$0]  %s385, 128, %s387, [#allocation4]
    $region65: #{tpu_custom_call.1} parent=1 // pred_fallthru
      _
    // Predicated region
    $region66: #{tpu_custom_call.1} parent=1 // pred_check
      _
    $region67: #{tpu_custom_call.1} parent=1 // pred_check_branch
      %391 = sbr.rel (0) target = $region69
    $region68: #{tpu_custom_call.1} parent=1 // pred_region
      %393 = dma.done [#allocation4], 128
    $region69: #{tpu_custom_call.1} parent=1 // pred_fallthru
      _
    %394 = vsyncpa [#allocation3], 1
    %395 = vsyncpa [#allocation6], 1
    %396 = vsyncpa [#allocation9], 1
    %397 = vsyncpa [#allocation4], 1

</llo_original>
